<compile_context>
chip_gen: v6e
topology: v6e:2x2x1
jax: 0.10.0
libtpu: 0.0.40
codegen_flags: <defaults>
</compile_context>

<pallas_src>
import math
from functools import partial

import jax
import jax.numpy as jnp
from jax.experimental import pallas as pl
from jax.experimental.pallas import tpu as pltpu


# ---------------- VMEM budgets (generation-safe) ----------------

try:  # v5e/v6e: 128 MiB physical VMEM, v7x: 64 MiB per TensorCore.
    _VMEM_CAP = int(getattr(pltpu.get_tpu_info(), "vmem_capacity_bytes", 64 << 20))
except Exception:  # conservative fallback
    _VMEM_CAP = 64 << 20

_VMEM_LIMIT = min(48 << 20, (_VMEM_CAP * 3) // 4)   # scoped VMEM we request
_BLOCK_BUDGET = _VMEM_LIMIT // 2                    # double-buffered block footprint cap
_FUSED_BUDGET = _VMEM_LIMIT // 3                    # whole-problem-in-VMEM threshold


def _round_up(x: int, m: int) -> int:
    return ((x + m - 1) // m) * m


def _pick_lane_tile(hw_padded: int, per_col_bytes: int) -> int:
    """Largest lane tile (multiple of 128) dividing hw_padded whose double-buffered
    footprint (per_col_bytes per lane column) stays within the block budget."""
    assert hw_padded % 128 == 0
    cap_cols = max(128, (_BLOCK_BUDGET // (2 * per_col_bytes)) // 128 * 128)
    m = hw_padded // 128
    best = 1
    for d in range(1, m + 1):
        if m % d == 0 and 128 * d <= cap_cols:
            best = d
    return 128 * best


# ---------------- Pallas kernels ----------------

def _stats_kernel(x_ref, sum_ref, gram_ref):
    """Per-(sample, lane-chunk) partial statistics of x (weight folded in later).

    x_ref: (1, C_in, tl); sum_ref: (1, 1, C_in, 1); gram_ref: (1, 1, C_in, C_in).
    mean(y) = W @ sum(x)/count ; E[y^2] = diag(W G W^T)/count with G = sum x x^T.
    """
    x = x_ref[0].astype(jnp.float32)                                  # (C_in, tl)
    gram_ref[0, 0] = jax.lax.dot_general(                             # contract lanes
        x, x, (((1,), (1,)), ((), ())), preferred_element_type=jnp.float32)
    sum_ref[0, 0] = jnp.sum(x, axis=1, keepdims=True)                 # (C_in, 1)


def _apply_kernel(x_ref, w_ref, shift_ref, o_ref):
    """y = (scale*W) @ x + shift ; BN scale is pre-folded into w_ref."""
    y = jnp.dot(w_ref[...], x_ref[0].astype(jnp.float32),
                preferred_element_type=jnp.float32)                   # (C_out, tl)
    o_ref[0] = (y + shift_ref[...]).astype(o_ref.dtype)


def _fused_kernel(x_ref, w_ref, gamma_ref, beta_ref, o_ref, *, count, eps):
    """Single-launch path: whole (padded) x and out resident in VMEM."""
    n = x_ref.shape[0]
    w = w_ref[...]                                                    # (C_out, C_in) f32
    c_in = w.shape[1]
    gram = jnp.zeros((c_in, c_in), jnp.float32)
    xsum = jnp.zeros((c_in, 1), jnp.float32)
    for i in range(n):                                                # static unroll over batch
        xi = x_ref[i].astype(jnp.float32)                             # (C_in, HWp)
        gram = gram + jax.lax.dot_general(
            xi, xi, (((1,), (1,)), ((), ())), preferred_element_type=jnp.float32)
        xsum = xsum + jnp.sum(xi, axis=1, keepdims=True)
    inv_count = 1.0 / count
    mean = jnp.dot(w, xsum, preferred_element_type=jnp.float32) * inv_count      # (C_out, 1)
    ey2 = jnp.sum(jnp.dot(w, gram, preferred_element_type=jnp.float32) * w,
                  axis=1, keepdims=True) * inv_count                              # (C_out, 1)
    var = jnp.maximum(ey2 - mean * mean, 0.0)                         # guard cancellation
    inv_std = 1.0 / jnp.sqrt(var + eps)
    scale = gamma_ref[...] * inv_std                                  # (C_out, 1)
    shift = beta_ref[...] - mean * scale
    w_eff = w * scale                                                 # BN scale folded into W
    for i in range(n):
        y = jnp.dot(w_eff, x_ref[i].astype(jnp.float32),
                    preferred_element_type=jnp.float32)
        o_ref[i] = (y + shift).astype(o_ref.dtype)


# ---------------- wrapper ----------------

@partial(jax.jit, static_argnames=("eps", "force_two_pass"))
def conv1x1_bn(x_nchw, w, gamma, beta, eps=1e-5, force_two_pass=False):
    """x_nchw: (N, C_in, H, W); w: (C_out, C_in, 1, 1); gamma/beta: (C_out,)."""
    N, C_in, H, W = x_nchw.shape
    C_out = w.shape[0]
    HW = H * W
    HWp = _round_up(HW, 128)              # lane padding -> unmasked lane-dense stores
    count = float(N * HW)                 # padded zero pixels do not count

    x3d = x_nchw.reshape(N, C_in, HW)     # NCHW view: pixels on lanes, no transpose
    if HWp != HW:
        x3d = jnp.pad(x3d, ((0, 0), (0, 0), (0, HWp - HW)))
    w2d = w.reshape(C_out, C_in).astype(jnp.float32)
    gamma2d = gamma.astype(jnp.float32).reshape(C_out, 1)
    beta2d = beta.astype(jnp.float32).reshape(C_out, 1)

    itemsize = 4  # internal compute/accumulation in f32
    fused_bytes = itemsize * (HWp * (N * C_in + N * C_out + C_out) + C_out * C_in)
    hp = jax.lax.Precision.HIGHEST        # tiny wrapper folds stay exact

    if fused_bytes <= _FUSED_BUDGET and not force_two_pass:
        # ---- fused fast path: single launch, x read from HBM once ----
        out3d = pl.pallas_call(
            partial(_fused_kernel, count=count, eps=eps),
            out_shape=jax.ShapeDtypeStruct((N, C_out, HWp), x_nchw.dtype),
            in_specs=[pl.BlockSpec(memory_space=pltpu.MemorySpace.VMEM)] * 4,
            out_specs=pl.BlockSpec(memory_space=pltpu.MemorySpace.VMEM),
            compiler_params=pltpu.CompilerParams(vmem_limit_bytes=_VMEM_LIMIT),
        )(x3d, w2d, gamma2d, beta2d)
    else:
        # ---- pass 1: per-(sample, lane-chunk) partial stats, both axes parallel ----
        tl1 = _pick_lane_tile(HWp, C_in * itemsize)
        J1 = HWp // tl1
        psum, pgram = pl.pallas_call(
            _stats_kernel,
            out_shape=(
                jax.ShapeDtypeStruct((N, J1, C_in, 1), jnp.float32),
                jax.ShapeDtypeStruct((N, J1, C_in, C_in), jnp.float32),
            ),
            grid_spec=pltpu.PrefetchScalarGridSpec(
                num_scalar_prefetch=0,
                grid=(N, J1),
                in_specs=[pl.BlockSpec((1, C_in, tl1), lambda n, j: (n, 0, j))],
                out_specs=[
                    pl.BlockSpec((1, 1, C_in, 1), lambda n, j: (n, j, 0, 0)),
                    pl.BlockSpec((1, 1, C_in, C_in), lambda n, j: (n, j, 0, 0)),
                ],
            ),
            compiler_params=pltpu.CompilerParams(
                dimension_semantics=("parallel", "parallel"),
                vmem_limit_bytes=_VMEM_LIMIT),
        )(x3d)

        # ---- fold stats + weight into a per-channel affine (tiny, jit-fused) ----
        total_sum = jnp.sum(psum, axis=(0, 1))                         # (C_in, 1)
        total_gram = jnp.sum(pgram, axis=(0, 1))                       # (C_in, C_in)
        mean = jnp.dot(w2d, total_sum, precision=hp) / count           # (C_out, 1)
        ey2 = jnp.sum(jnp.dot(w2d, total_gram, precision=hp) * w2d,
                      axis=1, keepdims=True) / count                   # (C_out, 1)
        var = jnp.maximum(ey2 - mean * mean, 0.0)                      # guard cancellation
        inv_std = jax.lax.rsqrt(var + eps)
        scale = gamma2d * inv_std
        shift = beta2d - mean * scale
        w_eff = w2d * scale                                            # fold BN scale into W

        # ---- pass 2: recompute conv tile + broadcast-add shift, lane-dense stores ----
        tl2 = _pick_lane_tile(HWp, (C_in + C_out) * itemsize)
        out3d = pl.pallas_call(
            _apply_kernel,
            out_shape=jax.ShapeDtypeStruct((N, C_out, HWp), x_nchw.dtype),
            grid_spec=pltpu.PrefetchScalarGridSpec(
                num_scalar_prefetch=0,
                grid=(N, HWp // tl2),
                in_specs=[
                    pl.BlockSpec((1, C_in, tl2), lambda n, j: (n, 0, j)),
                    pl.BlockSpec((C_out, C_in), lambda n, j: (0, 0)),
                    pl.BlockSpec((C_out, 1), lambda n, j: (0, 0)),
                ],
                out_specs=pl.BlockSpec((1, C_out, tl2), lambda n, j: (n, 0, j)),
            ),
            compiler_params=pltpu.CompilerParams(
                dimension_semantics=("parallel", "parallel"),
                vmem_limit_bytes=_VMEM_LIMIT),
        )(x3d, w_eff, shift)

    if HWp != HW:
        out3d = out3d[:, :, :HW]
    return out3d.reshape(N, C_out, H, W)


class ConnectorConvBNPallas:
    """JAX/Pallas port of ConnectorConvBN (kernel_size=1 path)."""

    def __init__(self, s_channels, t_channels, kernel_size=1, key=None):
        assert len(s_channels) == len(t_channels), "unequal length of feat list"
        # TODO(synk): kernel_size > 1 (spatial conv via im2col) not implemented; module default is 1.
        assert kernel_size == 1
        if key is None:
            key = jax.random.PRNGKey(0)
        self.params = []
        for idx, (s, t) in enumerate(zip(s_channels, t_channels)):
            k = jax.random.fold_in(key, idx)
            n = kernel_size * kernel_size * t
            w = jax.random.normal(k, (t, s, kernel_size, kernel_size), jnp.float32) * math.sqrt(2.0 / n)
            gamma = jnp.ones((t,), jnp.float32)
            beta = jnp.zeros((t,), jnp.float32)
            self.params.append((w, gamma, beta))

    def __call__(self, g_s):
        return [conv1x1_bn(x, w, g, b) for x, (w, g, b) in zip(g_s, self.params)]


# ---------------- pure-JAX reference ----------------

def _ref_conv_bn(x, w, gamma, beta, eps=1e-5):
    y = jnp.einsum("nchw,oc->nohw", x, w[:, :, 0, 0])
    mean = y.mean(axis=(0, 2, 3), keepdims=True)
    var = ((y - mean) ** 2).mean(axis=(0, 2, 3), keepdims=True)
    return (y - mean) / jnp.sqrt(var + eps) * gamma.reshape(1, -1, 1, 1) + beta.reshape(1, -1, 1, 1)


if __name__ == "__main__":
    key = jax.random.PRNGKey(0)
    k_in1, k_in2, k_params = jax.random.split(key, 3)

    s_channels = [4, 8]
    t_channels = [8, 16]

    # student feature maps (NCHW, like PyTorch); second one has H*W=64 -> exercises lane padding
    g_s = [
        jax.random.normal(k_in1, (2, 4, 16, 16), jnp.float32),
        jax.random.normal(k_in2, (2, 8, 8, 8), jnp.float32),
    ]

    model = ConnectorConvBNPallas(s_channels, t_channels, kernel_size=1, key=k_params)

    # fused single-kernel fast path
    outs = model(g_s)
    outs = [jax.block_until_ready(o) for o in outs]
    for x, (w, g, b), o in zip(g_s, model.params, outs):
        ref = _ref_conv_bn(x, w, g, b)
        assert o.shape == ref.shape, (o.shape, ref.shape)
        assert jnp.allclose(o, ref, atol=1e-4, rtol=1e-4), float(jnp.max(jnp.abs(o - ref)))

    # tiled two-pass path (Gram stats kernel + scale-folded apply kernel)
    for x, (w, g, b) in zip(g_s, model.params):
        o = jax.block_until_ready(conv1x1_bn(x, w, g, b, force_two_pass=True))
        ref = _ref_conv_bn(x, w, g, b)
        assert o.shape == ref.shape, (o.shape, ref.shape)
        assert jnp.allclose(o, ref, atol=1e-4, rtol=1e-4), float(jnp.max(jnp.abs(o - ref)))

    print("KERNEL_OK")
</pallas_src>

<mosaic_0001>
module attributes {stable_mosaic.version = 11 : i64} {
  func.func @_fused_kernel(%arg0: memref<2x4x256xf32, #tpu.memory_space<vmem>>, %arg1: memref<8x4xf32, #tpu.memory_space<vmem>>, %arg2: memref<8x1xf32, #tpu.memory_space<vmem>>, %arg3: memref<8x1xf32, #tpu.memory_space<vmem>>, %arg4: memref<2x8x256xf32, #tpu.memory_space<vmem>>) attributes {dimension_semantics = [], scalar_prefetch = 0 : i64, scratch_operands = 0 : i64, tpu.core_type = #tpu.core_type<tc>} {
    %c0 = arith.constant 0 : index
    %c0_0 = arith.constant 0 : index
    %0 = vector.load %arg1[%c0, %c0_0] : memref<8x4xf32, #tpu.memory_space<vmem>>, vector<8x4xf32>
    %cst = arith.constant 0.000000e+00 : f32
    %1 = vector.broadcast %cst : f32 to vector<4x4xf32>
    %cst_1 = arith.constant 0.000000e+00 : f32
    %2 = vector.broadcast %cst_1 : f32 to vector<4x1xf32>
    %c0_2 = arith.constant 0 : index
    %c0_3 = arith.constant 0 : index
    %c0_4 = arith.constant 0 : index
    %3 = vector.load %arg0[%c0_2, %c0_3, %c0_4] : memref<2x4x256xf32, #tpu.memory_space<vmem>>, vector<1x4x256xf32>
    %4 = vector.shape_cast %3 : vector<1x4x256xf32> to vector<4x256xf32>
    %cst_5 = arith.constant dense<0.000000e+00> : vector<4x4xf32>
    %5 = tpu.matmul %4, %4, %cst_5 {dimension_numbers = #tpu.dot_dimension_numbers<[1], [1], [0], [0], [0, 0, 1, 0], [], []>} : vector<4x256xf32>, vector<4x256xf32>, vector<4x4xf32> -> vector<4x4xf32>
    %6 = arith.addf %1, %5 : vector<4x4xf32>
    %cst_6 = arith.constant dense<0.000000e+00> : vector<4xf32>
    %7 = vector.multi_reduction <add>, %4, %cst_6 [1] : vector<4x256xf32> to vector<4xf32>
    %8 = vector.shape_cast %7 : vector<4xf32> to vector<4x1xf32>
    %9 = arith.addf %2, %8 : vector<4x1xf32>
    %c1 = arith.constant 1 : index
    %c0_7 = arith.constant 0 : index
    %c0_8 = arith.constant 0 : index
    %10 = vector.load %arg0[%c1, %c0_7, %c0_8] : memref<2x4x256xf32, #tpu.memory_space<vmem>>, vector<1x4x256xf32>
    %11 = vector.shape_cast %10 : vector<1x4x256xf32> to vector<4x256xf32>
    %cst_9 = arith.constant dense<0.000000e+00> : vector<4x4xf32>
    %12 = tpu.matmul %11, %11, %cst_9 {dimension_numbers = #tpu.dot_dimension_numbers<[1], [1], [0], [0], [0, 0, 1, 0], [], []>} : vector<4x256xf32>, vector<4x256xf32>, vector<4x4xf32> -> vector<4x4xf32>
    %13 = arith.addf %6, %12 : vector<4x4xf32>
    %cst_10 = arith.constant dense<0.000000e+00> : vector<4xf32>
    %14 = vector.multi_reduction <add>, %11, %cst_10 [1] : vector<4x256xf32> to vector<4xf32>
    %15 = vector.shape_cast %14 : vector<4xf32> to vector<4x1xf32>
    %16 = arith.addf %9, %15 : vector<4x1xf32>
    %cst_11 = arith.constant dense<0.000000e+00> : vector<8x1xf32>
    %17 = tpu.matmul %0, %16, %cst_11 {dimension_numbers = #tpu.dot_dimension_numbers<[1], [0], [0], [1], [0, 0, 1, 1], [], []>} : vector<8x4xf32>, vector<4x1xf32>, vector<8x1xf32> -> vector<8x1xf32>
    %cst_12 = arith.constant 0.001953125 : f32
    %18 = vector.broadcast %cst_12 : f32 to vector<8x1xf32>
    %19 = arith.mulf %17, %18 : vector<8x1xf32>
    %cst_13 = arith.constant dense<0.000000e+00> : vector<8x4xf32>
    %20 = tpu.matmul %0, %13, %cst_13 {dimension_numbers = #tpu.dot_dimension_numbers<[1], [0], [0], [1], [0, 0, 1, 1], [], []>} : vector<8x4xf32>, vector<4x4xf32>, vector<8x4xf32> -> vector<8x4xf32>
    %21 = arith.mulf %20, %0 : vector<8x4xf32>
    %cst_14 = arith.constant dense<0.000000e+00> : vector<8xf32>
    %22 = vector.multi_reduction <add>, %21, %cst_14 [1] : vector<8x4xf32> to vector<8xf32>
    %23 = vector.shape_cast %22 : vector<8xf32> to vector<8x1xf32>
    %cst_15 = arith.constant 0.001953125 : f32
    %24 = vector.broadcast %cst_15 : f32 to vector<8x1xf32>
    %25 = arith.mulf %23, %24 : vector<8x1xf32>
    %26 = arith.mulf %19, %19 : vector<8x1xf32>
    %27 = arith.subf %25, %26 : vector<8x1xf32>
    %cst_16 = arith.constant 0.000000e+00 : f32
    %28 = vector.broadcast %cst_16 : f32 to vector<8x1xf32>
    %29 = arith.maximumf %27, %28 : vector<8x1xf32>
    %cst_17 = arith.constant 9.99999974E-6 : f32
    %30 = vector.broadcast %cst_17 : f32 to vector<8x1xf32>
    %31 = arith.addf %29, %30 : vector<8x1xf32>
    %32 = math.sqrt %31 : vector<8x1xf32>
    %cst_18 = arith.constant 1.000000e+00 : f32
    %33 = vector.broadcast %cst_18 : f32 to vector<8x1xf32>
    %34 = arith.divf %33, %32 : vector<8x1xf32>
    %c0_19 = arith.constant 0 : index
    %c0_20 = arith.constant 0 : index
    %35 = vector.load %arg2[%c0_19, %c0_20] : memref<8x1xf32, #tpu.memory_space<vmem>>, vector<8x1xf32>
    %36 = arith.mulf %35, %34 : vector<8x1xf32>
    %c0_21 = arith.constant 0 : index
    %c0_22 = arith.constant 0 : index
    %37 = vector.load %arg3[%c0_21, %c0_22] : memref<8x1xf32, #tpu.memory_space<vmem>>, vector<8x1xf32>
    %38 = arith.mulf %19, %36 : vector<8x1xf32>
    %39 = arith.subf %37, %38 : vector<8x1xf32>
    %40 = vector.broadcast %36 : vector<8x1xf32> to vector<8x4xf32>
    %41 = arith.mulf %0, %40 : vector<8x4xf32>
    %c0_23 = arith.constant 0 : index
    %c0_24 = arith.constant 0 : index
    %c0_25 = arith.constant 0 : index
    %42 = vector.load %arg0[%c0_23, %c0_24, %c0_25] : memref<2x4x256xf32, #tpu.memory_space<vmem>>, vector<1x4x256xf32>
    %43 = vector.shape_cast %42 : vector<1x4x256xf32> to vector<4x256xf32>
    %cst_26 = arith.constant dense<0.000000e+00> : vector<8x256xf32>
    %44 = tpu.matmul %41, %43, %cst_26 {dimension_numbers = #tpu.dot_dimension_numbers<[1], [0], [0], [1], [0, 0, 1, 1], [], []>} : vector<8x4xf32>, vector<4x256xf32>, vector<8x256xf32> -> vector<8x256xf32>
    %45 = vector.broadcast %39 : vector<8x1xf32> to vector<8x256xf32>
    %46 = arith.addf %44, %45 : vector<8x256xf32>
    %c0_27 = arith.constant 0 : index
    %c0_28 = arith.constant 0 : index
    %c0_29 = arith.constant 0 : index
    %47 = vector.load %arg4[%c0_27, %c0_28, %c0_29] : memref<2x8x256xf32, #tpu.memory_space<vmem>>, vector<1x8x256xf32>
    %48 = vector.shape_cast %47 : vector<1x8x256xf32> to vector<8x256xf32>
    %49 = vector.shape_cast %46 : vector<8x256xf32> to vector<1x8x256xf32>
    tpu.vector_store %arg4[%c0_27, %c0_28, %c0_29], %49 {strides = array<i32>} : memref<2x8x256xf32, #tpu.memory_space<vmem>>, vector<1x8x256xf32>,
    %c1_30 = arith.constant 1 : index
    %c0_31 = arith.constant 0 : index
    %c0_32 = arith.constant 0 : index
    %50 = vector.load %arg0[%c1_30, %c0_31, %c0_32] : memref<2x4x256xf32, #tpu.memory_space<vmem>>, vector<1x4x256xf32>
    %51 = vector.shape_cast %50 : vector<1x4x256xf32> to vector<4x256xf32>
    %cst_33 = arith.constant dense<0.000000e+00> : vector<8x256xf32>
    %52 = tpu.matmul %41, %51, %cst_33 {dimension_numbers = #tpu.dot_dimension_numbers<[1], [0], [0], [1], [0, 0, 1, 1], [], []>} : vector<8x4xf32>, vector<4x256xf32>, vector<8x256xf32> -> vector<8x256xf32>
    %53 = vector.broadcast %39 : vector<8x1xf32> to vector<8x256xf32>
    %54 = arith.addf %52, %53 : vector<8x256xf32>
    %c1_34 = arith.constant 1 : index
    %c0_35 = arith.constant 0 : index
    %c0_36 = arith.constant 0 : index
    %55 = vector.load %arg4[%c1_34, %c0_35, %c0_36] : memref<2x8x256xf32, #tpu.memory_space<vmem>>, vector<1x8x256xf32>
    %56 = vector.shape_cast %55 : vector<1x8x256xf32> to vector<8x256xf32>
    %57 = vector.shape_cast %54 : vector<8x256xf32> to vector<1x8x256xf32>
    tpu.vector_store %arg4[%c1_34, %c0_35, %c0_36], %57 {strides = array<i32>} : memref<2x8x256xf32, #tpu.memory_space<vmem>>, vector<1x8x256xf32>,
    return
  }
}

</mosaic_0001>

<llo_original>
// kernel: conv1x1_bn.1
$region0: #{conv1x1_bn.1}
  #allocation0 [shape = 'u32[]', space=smem, size = 0x4, offset = 0x4, fixed_abs, tag = 'smem constant byte address 0x4 - core index']
  #allocation1 [shape = 'u32[144,128]{1,0:T(1,128)}', space=vmem, size = 0x12000, scoped, tag = 'internal scratch']
  %s0 = inlined_call_operand.vmem [shape: f32[2,4,256], index: 0, kind: input, shape index: {}]
  %s1 = inlined_call_operand.vmem [shape: f32[8,4], index: 1, kind: input, shape index: {}]
  %s2 = inlined_call_operand.vmem [shape: f32[8,1], index: 2, kind: input, shape index: {}]
  %s3 = inlined_call_operand.vmem [shape: f32[8,1], index: 3, kind: input, shape index: {}]
  %s4 = inlined_call_operand.vmem [shape: f32[2,8,256], index: 4, kind: output, shape index: {}]
  %s5 = sld [smem:[#allocation0]]
  $region26: #{conv1x1_bn.1} parent=0
    _
  %s7 = ssub.s32 1, %s5
  %s8 = scalar_select 0, %s7, %s5
  // Predicated region
  $region2: #{conv1x1_bn.1} parent=0 // pred_check
    _
  $region3: #{conv1x1_bn.1} parent=0 // pred_check_branch
    %10 = sbr.rel (0) target = $region5
  $region4: #{conv1x1_bn.1} parent=0 // pred_region
    _
  $region5: #{conv1x1_bn.1} parent=0 // pred_fallthru
    _
  // Predicated region
  $region6: #{conv1x1_bn.1} parent=0 // pred_check
    _
  $region7: #{conv1x1_bn.1} parent=0 // pred_check_branch
    %12 = sbr.rel (0) target = $region9
  $region8: #{conv1x1_bn.1} parent=0 // pred_region
    _
  $region9: #{conv1x1_bn.1} parent=0 // pred_fallthru
    _
  // Predicated region
  $region10: #{conv1x1_bn.1} parent=0 // pred_check
    _
  $region11: #{conv1x1_bn.1} parent=0 // pred_check_branch
    %14 = sbr.rel (0) target = $region13
  $region12: #{conv1x1_bn.1} parent=0 // pred_region
    _
  $region13: #{conv1x1_bn.1} parent=0 // pred_fallthru
    _
  // Predicated region
  $region14: #{conv1x1_bn.1} parent=0 // pred_check
    _
  $region15: #{conv1x1_bn.1} parent=0 // pred_check_branch
    %16 = sbr.rel (0) target = $region17
  $region16: #{conv1x1_bn.1} parent=0 // pred_region
    _
  $region17: #{conv1x1_bn.1} parent=0 // pred_fallthru
    _
  %v17 = vld [vmem:[%s1] sm:$0xff]
  %v18 = vld [vmem:[%s0] sm:$0xff]
  %v20 = vcombine.high %v18, %v18
  %vm22 = vcmask 1043456
  %v23 = vsel %vm22, %v18, 0.0
  %v24 = vsel %vm22, %v20, 0.0
  %v25 = vadd.f32 %v23, %v24
  %26 = vadd.xlane.f32.xlu0 %v25
  %v27 = vpop.xlane.xlu0 %26
  %v28 = vadd.f32 %v27, 0.0
  %s29 = scalar_lea.vmem %s0, 8
  %v30 = vld [vmem:[%s29] sm:$0xff]
  %v32 = vcombine.high %v30, %v30
  %34 = vmatprep.subr.mxu0 0.0
  %35 = vmatpush1.xpose.msra.mxu0 0.0
  %36 = vmatprep.subr.mxu0 0.0
  %37 = vmatpush1.xpose.msra.mxu0 0.0
  %38 = vmatprep.subr.mxu0 0.0
  %39 = vmatpush1.xpose.msra.mxu0 0.0
  %40 = vmatprep.subr.mxu0 0.0
  %41 = vmatpush1.xpose.msra.mxu0 0.0
  %42 = vmatprep.subr.mxu0 0.0
  %43 = vmatpush1.xpose.msra.mxu0 0.0
  %44 = vmatprep.subr.mxu0 0.0
  %45 = vmatpush1.xpose.msra.mxu0 0.0
  %46 = vmatprep.subr.mxu0 0.0
  %47 = vmatpush1.xpose.msra.mxu0 0.0
  %48 = vmatprep.subr.mxu0 0.0
  %49 = vmatpush1.xpose.msra.mxu0 0.0
  %50 = vmatprep.subr.mxu0 0.0
  %51 = vmatpush1.xpose.msra.mxu0 0.0
  %52 = vmatprep.subr.mxu0 0.0
  %53 = vmatpush1.xpose.msra.mxu0 0.0
  %54 = vmatprep.subr.mxu0 0.0
  %55 = vmatpush1.xpose.msra.mxu0 0.0
  %56 = vmatprep.subr.mxu0 0.0
  %57 = vmatpush1.xpose.msra.mxu0 0.0
  %58 = vmatprep.subr.mxu0 0.0
  %59 = vmatpush1.xpose.msra.mxu0 0.0
  %60 = vmatprep.subr.mxu0 0.0
  %61 = vmatpush1.xpose.msra.mxu0 0.0
  %62 = vmatprep.subr.mxu0 0.0
  %63 = vmatpush1.xpose.msra.mxu0 0.0
  %64 = vmatprep.subr.mxu0 %v32
  %65 = vmatpush1.xpose.msra.mxu0 %v30
  %66 = vmatprep.subr.mxu0 0.0
  %67 = vmatpush2.xpose.msra.mxu0 0.0
  %68 = vmatprep.subr.mxu0 0.0
  %69 = vmatpush2.xpose.msra.mxu0 0.0
  %70 = vmatprep.subr.mxu0 0.0
  %71 = vmatpush2.xpose.msra.mxu0 0.0
  %72 = vmatprep.subr.mxu0 0.0
  %73 = vmatpush2.xpose.msra.mxu0 0.0
  %74 = vmatprep.subr.mxu0 0.0
  %75 = vmatpush2.xpose.msra.mxu0 0.0
  %76 = vmatprep.subr.mxu0 0.0
  %77 = vmatpush2.xpose.msra.mxu0 0.0
  %78 = vmatprep.subr.mxu0 0.0
  %79 = vmatpush2.xpose.msra.mxu0 0.0
  %80 = vmatprep.subr.mxu0 0.0
  %81 = vmatpush2.xpose.msra.mxu0 0.0
  %82 = vmatprep.subr.mxu0 0.0
  %83 = vmatpush2.xpose.msra.mxu0 0.0
  %84 = vmatprep.subr.mxu0 0.0
  %85 = vmatpush2.xpose.msra.mxu0 0.0
  %86 = vmatprep.subr.mxu0 0.0
  %87 = vmatpush2.xpose.msra.mxu0 0.0
  %88 = vmatprep.subr.mxu0 0.0
  %89 = vmatpush2.xpose.msra.mxu0 0.0
  %90 = vmatprep.subr.mxu0 0.0
  %91 = vmatpush2.xpose.msra.mxu0 0.0
  %92 = vmatprep.subr.mxu0 0.0
  %93 = vmatpush2.xpose.msra.mxu0 0.0
  %94 = vmatprep.subr.mxu0 0.0
  %95 = vmatpush2.xpose.msra.mxu0 0.0
  %96 = vmatprep.subr.mxu0 0.0
  %97 = vmatpush2.xpose.msra.mxu0 0.0
  %98 = vmatprep.mubr.f32.mxu0 %v32
  %99 = vmatmul.mubr.f32.gmra.mxu0 %v30
  %v100 = vpop.f32.mrf.mxu0
  %v101 = vadd.f32 0.0, %v100
  %v102 = vpop.f32.mrf.mxu0
  %103 = vdwg.mxu0
  %104 = vmatprep.subr.mxu0 0.0
  %105 = vmatpush1.xpose.msra.mxu0 0.0
  %106 = vmatprep.subr.mxu0 0.0
  %107 = vmatpush1.xpose.msra.mxu0 0.0
  %108 = vmatprep.subr.mxu0 0.0
  %109 = vmatpush1.xpose.msra.mxu0 0.0
  %110 = vmatprep.subr.mxu0 0.0
  %111 = vmatpush1.xpose.msra.mxu0 0.0
  %112 = vmatprep.subr.mxu0 0.0
  %113 = vmatpush1.xpose.msra.mxu0 0.0
  %114 = vmatprep.subr.mxu0 0.0
  %115 = vmatpush1.xpose.msra.mxu0 0.0
  %116 = vmatprep.subr.mxu0 0.0
  %117 = vmatpush1.xpose.msra.mxu0 0.0
  %118 = vmatprep.subr.mxu0 0.0
  %119 = vmatpush1.xpose.msra.mxu0 0.0
  %120 = vmatprep.subr.mxu0 0.0
  %121 = vmatpush1.xpose.msra.mxu0 0.0
  %122 = vmatprep.subr.mxu0 0.0
  %123 = vmatpush1.xpose.msra.mxu0 0.0
  %124 = vmatprep.subr.mxu0 0.0
  %125 = vmatpush1.xpose.msra.mxu0 0.0
  %126 = vmatprep.subr.mxu0 0.0
  %127 = vmatpush1.xpose.msra.mxu0 0.0
  %128 = vmatprep.subr.mxu0 0.0
  %129 = vmatpush1.xpose.msra.mxu0 0.0
  %130 = vmatprep.subr.mxu0 0.0
  %131 = vmatpush1.xpose.msra.mxu0 0.0
  %132 = vmatprep.subr.mxu0 0.0
  %133 = vmatpush1.xpose.msra.mxu0 0.0
  %134 = vmatprep.subr.mxu0 %v20
  %135 = vmatpush1.xpose.msra.mxu0 %v18
  %136 = vmatprep.subr.mxu0 0.0
  %137 = vmatpush2.xpose.msra.mxu0 0.0
  %138 = vmatprep.subr.mxu0 0.0
  %139 = vmatpush2.xpose.msra.mxu0 0.0
  %140 = vmatprep.subr.mxu0 0.0
  %141 = vmatpush2.xpose.msra.mxu0 0.0
  %142 = vmatprep.subr.mxu0 0.0
  %143 = vmatpush2.xpose.msra.mxu0 0.0
  %144 = vmatprep.subr.mxu0 0.0
  %145 = vmatpush2.xpose.msra.mxu0 0.0
  %146 = vmatprep.subr.mxu0 0.0
  %147 = vmatpush2.xpose.msra.mxu0 0.0
  %148 = vmatprep.subr.mxu0 0.0
  %149 = vmatpush2.xpose.msra.mxu0 0.0
  %150 = vmatprep.subr.mxu0 0.0
  %151 = vmatpush2.xpose.msra.mxu0 0.0
  %152 = vmatprep.subr.mxu0 0.0
  %153 = vmatpush2.xpose.msra.mxu0 0.0
  %154 = vmatprep.subr.mxu0 0.0
  %155 = vmatpush2.xpose.msra.mxu0 0.0
  %156 = vmatprep.subr.mxu0 0.0
  %157 = vmatpush2.xpose.msra.mxu0 0.0
  %158 = vmatprep.subr.mxu0 0.0
  %159 = vmatpush2.xpose.msra.mxu0 0.0
  %160 = vmatprep.subr.mxu0 0.0
  %161 = vmatpush2.xpose.msra.mxu0 0.0
  %162 = vmatprep.subr.mxu0 0.0
  %163 = vmatpush2.xpose.msra.mxu0 0.0
  %164 = vmatprep.subr.mxu0 0.0
  %165 = vmatpush2.xpose.msra.mxu0 0.0
  %166 = vmatprep.subr.mxu0 0.0
  %167 = vmatpush2.xpose.msra.mxu0 0.0
  %168 = vmatprep.mubr.f32.mxu0 %v20
  %169 = vmatmul.mubr.f32.gmra.mxu0 %v18
  %v170 = vpop.f32.mrf.mxu0
  %v171 = vadd.f32 %v101, %v170
  %v172 = vpop.f32.mrf.mxu0
  %173 = vdwg.mxu0
  %v174 = vsel %vm22, %v30, 0.0
  %v175 = vsel %vm22, %v32, 0.0
  %v176 = vadd.f32 %v174, %v175
  %177 = vadd.xlane.f32.xlu0 %v176
  %v178 = vpop.xlane.xlu0 %177
  %v179 = vadd.f32 %v28, %v178
  %vm180 = vcmask 31744
  %v182 = vsel %vm180, %v17, 0
  %v185 = vsel %vm22, %v179, 0
  %187 = vmatprep.subr.mxu0 0.0
  %188 = vmatpush1.msra.mxu0 0.0
  %189 = vmatprep.subr.mxu0 0.0
  %190 = vmatpush1.msra.mxu0 0.0
  %191 = vmatprep.subr.mxu0 0.0
  %192 = vmatpush1.msra.mxu0 0.0
  %193 = vmatprep.subr.mxu0 0.0
  %194 = vmatpush1.msra.mxu0 0.0
  %195 = vmatprep.subr.mxu0 0.0
  %196 = vmatpush1.msra.mxu0 0.0
  %197 = vmatprep.subr.mxu0 0.0
  %198 = vmatpush1.msra.mxu0 0.0
  %199 = vmatprep.subr.mxu0 0.0
  %200 = vmatpush1.msra.mxu0 0.0
  %201 = vmatprep.subr.mxu0 0.0
  %202 = vmatpush1.msra.mxu0 0.0
  %203 = vmatprep.subr.mxu0 0.0
  %204 = vmatpush1.msra.mxu0 0.0
  %205 = vmatprep.subr.mxu0 0.0
  %206 = vmatpush1.msra.mxu0 0.0
  %207 = vmatprep.subr.mxu0 0.0
  %208 = vmatpush1.msra.mxu0 0.0
  %209 = vmatprep.subr.mxu0 0.0
  %210 = vmatpush1.msra.mxu0 0.0
  %211 = vmatprep.subr.mxu0 0.0
  %212 = vmatpush1.msra.mxu0 0.0
  %213 = vmatprep.subr.mxu0 0.0
  %214 = vmatpush1.msra.mxu0 0.0
  %215 = vmatprep.subr.mxu0 0.0
  %216 = vmatpush1.msra.mxu0 0.0
  %217 = vmatprep.subr.mxu0 0.0
  %218 = vmatpush1.msra.mxu0 %v185
  %219 = vmatprep.subr.mxu0 0.0
  %220 = vmatpush2.msra.mxu0 0.0
  %221 = vmatprep.subr.mxu0 0.0
  %222 = vmatpush2.msra.mxu0 0.0
  %223 = vmatprep.subr.mxu0 0.0
  %224 = vmatpush2.msra.mxu0 0.0
  %225 = vmatprep.subr.mxu0 0.0
  %226 = vmatpush2.msra.mxu0 0.0
  %227 = vmatprep.subr.mxu0 0.0
  %228 = vmatpush2.msra.mxu0 0.0
  %229 = vmatprep.subr.mxu0 0.0
  %230 = vmatpush2.msra.mxu0 0.0
  %231 = vmatprep.subr.mxu0 0.0
  %232 = vmatpush2.msra.mxu0 0.0
  %233 = vmatprep.subr.mxu0 0.0
  %234 = vmatpush2.msra.mxu0 0.0
  %235 = vmatprep.subr.mxu0 0.0
  %236 = vmatpush2.msra.mxu0 0.0
  %237 = vmatprep.subr.mxu0 0.0
  %238 = vmatpush2.msra.mxu0 0.0
  %239 = vmatprep.subr.mxu0 0.0
  %240 = vmatpush2.msra.mxu0 0.0
  %241 = vmatprep.subr.mxu0 0.0
  %242 = vmatpush2.msra.mxu0 0.0
  %243 = vmatprep.subr.mxu0 0.0
  %244 = vmatpush2.msra.mxu0 0.0
  %245 = vmatprep.subr.mxu0 0.0
  %246 = vmatpush2.msra.mxu0 0.0
  %247 = vmatprep.subr.mxu0 0.0
  %248 = vmatpush2.msra.mxu0 0.0
  %249 = vmatprep.subr.mxu0 0.0
  %250 = vmatpush2.msra.mxu0 0.0
  %251 = vmatprep.mubr.f32.mxu0 0.0
  %252 = vmatmul.mubr.f32.gmra.mxu0 %v182
  %v253 = vpop.f32.mrf.mxu0
  %v254 = vadd.f32 0.0, %v253
  %v255 = vpop.f32.mrf.mxu0
  %256 = vdwg.mxu0
  %v257 = vmul.f32 %v254, 0.001953125
  %v259 = vsel %vm22, %v171, 0
  %261 = vmatprep.subr.mxu0 0.0
  %262 = vmatpush1.msra.mxu0 0.0
  %263 = vmatprep.subr.mxu0 0.0
  %264 = vmatpush1.msra.mxu0 0.0
  %265 = vmatprep.subr.mxu0 0.0
  %266 = vmatpush1.msra.mxu0 0.0
  %267 = vmatprep.subr.mxu0 0.0
  %268 = vmatpush1.msra.mxu0 0.0
  %269 = vmatprep.subr.mxu0 0.0
  %270 = vmatpush1.msra.mxu0 0.0
  %271 = vmatprep.subr.mxu0 0.0
  %272 = vmatpush1.msra.mxu0 0.0
  %273 = vmatprep.subr.mxu0 0.0
  %274 = vmatpush1.msra.mxu0 0.0
  %275 = vmatprep.subr.mxu0 0.0
  %276 = vmatpush1.msra.mxu0 0.0
  %277 = vmatprep.subr.mxu0 0.0
  %278 = vmatpush1.msra.mxu0 0.0
  %279 = vmatprep.subr.mxu0 0.0
  %280 = vmatpush1.msra.mxu0 0.0
  %281 = vmatprep.subr.mxu0 0.0
  %282 = vmatpush1.msra.mxu0 0.0
  %283 = vmatprep.subr.mxu0 0.0
  %284 = vmatpush1.msra.mxu0 0.0
  %285 = vmatprep.subr.mxu0 0.0
  %286 = vmatpush1.msra.mxu0 0.0
  %287 = vmatprep.subr.mxu0 0.0
  %288 = vmatpush1.msra.mxu0 0.0
  %289 = vmatprep.subr.mxu0 0.0
  %290 = vmatpush1.msra.mxu0 0.0
  %291 = vmatprep.subr.mxu0 0.0
  %292 = vmatpush1.msra.mxu0 %v259
  %293 = vmatprep.subr.mxu0 0.0
  %294 = vmatpush2.msra.mxu0 0.0
  %295 = vmatprep.subr.mxu0 0.0
  %296 = vmatpush2.msra.mxu0 0.0
  %297 = vmatprep.subr.mxu0 0.0
  %298 = vmatpush2.msra.mxu0 0.0
  %299 = vmatprep.subr.mxu0 0.0
  %300 = vmatpush2.msra.mxu0 0.0
  %301 = vmatprep.subr.mxu0 0.0
  %302 = vmatpush2.msra.mxu0 0.0
  %303 = vmatprep.subr.mxu0 0.0
  %304 = vmatpush2.msra.mxu0 0.0
  %305 = vmatprep.subr.mxu0 0.0
  %306 = vmatpush2.msra.mxu0 0.0
  %307 = vmatprep.subr.mxu0 0.0
  %308 = vmatpush2.msra.mxu0 0.0
  %309 = vmatprep.subr.mxu0 0.0
  %310 = vmatpush2.msra.mxu0 0.0
  %311 = vmatprep.subr.mxu0 0.0
  %312 = vmatpush2.msra.mxu0 0.0
  %313 = vmatprep.subr.mxu0 0.0
  %314 = vmatpush2.msra.mxu0 0.0
  %315 = vmatprep.subr.mxu0 0.0
  %316 = vmatpush2.msra.mxu0 0.0
  %317 = vmatprep.subr.mxu0 0.0
  %318 = vmatpush2.msra.mxu0 0.0
  %319 = vmatprep.subr.mxu0 0.0
  %320 = vmatpush2.msra.mxu0 0.0
  %321 = vmatprep.subr.mxu0 0.0
  %322 = vmatpush2.msra.mxu0 0.0
  %323 = vmatprep.subr.mxu0 0.0
  %324 = vmatpush2.msra.mxu0 0.0
  %325 = vmatprep.mubr.f32.mxu0 0.0
  %326 = vmatmul.mubr.f32.gmra.mxu0 %v182
  %v327 = vpop.f32.mrf.mxu0
  %v328 = vadd.f32 0.0, %v327
  %v329 = vpop.f32.mrf.mxu0
  %330 = vdwg.mxu0
  %v331 = vmul.f32 %v328, %v17
  %v332 = vsel %vm180, %v331, 0.0
  %333 = vadd.xlane.f32.xlu0 %v332
  %v334 = vpop.xlane.xlu0 %333
  %v335 = vmul.f32 %v334, 0.001953125
  %v336 = vmul.f32 %v257, %v257
  %v337 = vsub.f32 %v335, %v336
  %v338 = vmax.f32 %v337, 0.0
  %v339 = vadd.f32 %v338, 1e-05
  %v340 = vrsqrt.pop %v339
  %v341 = vmul.f32 %v339, %v340
  %vm342 = vcmp.eq.f32.partialorder %v339, inf
  %v343 = vsel %vm342, %v339, %v341
  %vm344 = vcmp.eq.f32.partialorder %v339, 0.0
  %v345 = vand.u32 %v339, 2147483648
  %v346 = vsel %vm344, %v345, %v343
  %v347 = vrcp.pop %v346
  %v348 = vmul.f32 1.0, %v347
  %v349 = vld [vmem:[%s2] sm:$0xff]
  %v350 = vmul.f32 %v349, %v348
  %v351 = vld [vmem:[%s3] sm:$0xff]
  %v352 = vmul.f32 %v257, %v350
  %v353 = vsub.f32 %v351, %v352
  %355 = vset.pattern.permute.xlu0 0
  %356 = vperm.xlu0 %355, %v350
  %v357 = vpop.permute.xlu0 %356
  %v359 = vmul.f32 %v17, %v357
  %361 = vset.pattern.permute.xlu0 0
  %362 = vperm.xlu0 %361, %v353
  %v363 = vpop.permute.xlu0 %362
  %v366 = vsel %vm180, %v359, 0
  %v368 = vsel %vm22, %v18, 0
  %v370 = vsel %vm22, %v20, 0
  %372 = vmatprep.subr.mxu0 0.0
  %373 = vmatpush1.msra.mxu0 0.0
  %374 = vmatprep.subr.mxu0 0.0
  %375 = vmatpush1.msra.mxu0 0.0
  %376 = vmatprep.subr.mxu0 0.0
  %377 = vmatpush1.msra.mxu0 0.0
  %378 = vmatprep.subr.mxu0 0.0
  %379 = vmatpush1.msra.mxu0 0.0
  %380 = vmatprep.subr.mxu0 0.0
  %381 = vmatpush1.msra.mxu0 0.0
  %382 = vmatprep.subr.mxu0 0.0
  %383 = vmatpush1.msra.mxu0 0.0
  %384 = vmatprep.subr.mxu0 0.0
  %385 = vmatpush1.msra.mxu0 0.0
  %386 = vmatprep.subr.mxu0 0.0
  %387 = vmatpush1.msra.mxu0 0.0
  %388 = vmatprep.subr.mxu0 0.0
  %389 = vmatpush1.msra.mxu0 0.0
  %390 = vmatprep.subr.mxu0 0.0
  %391 = vmatpush1.msra.mxu0 0.0
  %392 = vmatprep.subr.mxu0 0.0
  %393 = vmatpush1.msra.mxu0 0.0
  %394 = vmatprep.subr.mxu0 0.0
  %395 = vmatpush1.msra.mxu0 0.0
  %396 = vmatprep.subr.mxu0 0.0
  %397 = vmatpush1.msra.mxu0 0.0
  %398 = vmatprep.subr.mxu0 0.0
  %399 = vmatpush1.msra.mxu0 0.0
  %400 = vmatprep.subr.mxu0 0.0
  %401 = vmatpush1.msra.mxu0 0.0
  %402 = vmatprep.subr.mxu0 %v370
  %403 = vmatpush1.msra.mxu0 %v368
  %404 = vmatprep.subr.mxu0 0.0
  %405 = vmatpush2.msra.mxu0 0.0
  %406 = vmatprep.subr.mxu0 0.0
  %407 = vmatpush2.msra.mxu0 0.0
  %408 = vmatprep.subr.mxu0 0.0
  %409 = vmatpush2.msra.mxu0 0.0
  %410 = vmatprep.subr.mxu0 0.0
  %411 = vmatpush2.msra.mxu0 0.0
  %412 = vmatprep.subr.mxu0 0.0
  %413 = vmatpush2.msra.mxu0 0.0
  %414 = vmatprep.subr.mxu0 0.0
  %415 = vmatpush2.msra.mxu0 0.0
  %416 = vmatprep.subr.mxu0 0.0
  %417 = vmatpush2.msra.mxu0 0.0
  %418 = vmatprep.subr.mxu0 0.0
  %419 = vmatpush2.msra.mxu0 0.0
  %420 = vmatprep.subr.mxu0 0.0
  %421 = vmatpush2.msra.mxu0 0.0
  %422 = vmatprep.subr.mxu0 0.0
  %423 = vmatpush2.msra.mxu0 0.0
  %424 = vmatprep.subr.mxu0 0.0
  %425 = vmatpush2.msra.mxu0 0.0
  %426 = vmatprep.subr.mxu0 0.0
  %427 = vmatpush2.msra.mxu0 0.0
  %428 = vmatprep.subr.mxu0 0.0
  %429 = vmatpush2.msra.mxu0 0.0
  %430 = vmatprep.subr.mxu0 0.0
  %431 = vmatpush2.msra.mxu0 0.0
  %432 = vmatprep.subr.mxu0 0.0
  %433 = vmatpush2.msra.mxu0 0.0
  %434 = vmatprep.subr.mxu0 0.0
  %435 = vmatpush2.msra.mxu0 0.0
  %436 = vmatprep.mubr.f32.mxu0 0.0
  %437 = vmatmul.mubr.f32.gmra.mxu0 %v366
  %v438 = vpop.f32.mrf.mxu0
  %v439 = vadd.f32 %v363, %v438
  %v440 = vpop.f32.mrf.mxu0
  %v441 = vadd.f32 %v363, %v440
  %442 = vdwg.mxu0
  %443 = vst [vmem:[%s4] sm:$0xff] %v439
  %444 = vst [vmem:[%s4 + $0x8] sm:$0xff] %v441
  %v445 = vld [vmem:[%s29] sm:$0xff]
  %v447 = vcombine.high %v445, %v445
  %v448 = vsel %vm22, %v445, 0
  %v450 = vsel %vm22, %v447, 0
  %452 = vmatprep.subr.mxu0 0.0
  %453 = vmatpush1.msra.mxu0 0.0
  %454 = vmatprep.subr.mxu0 0.0
  %455 = vmatpush1.msra.mxu0 0.0
  %456 = vmatprep.subr.mxu0 0.0
  %457 = vmatpush1.msra.mxu0 0.0
  %458 = vmatprep.subr.mxu0 0.0
  %459 = vmatpush1.msra.mxu0 0.0
  %460 = vmatprep.subr.mxu0 0.0
  %461 = vmatpush1.msra.mxu0 0.0
  %462 = vmatprep.subr.mxu0 0.0
  %463 = vmatpush1.msra.mxu0 0.0
  %464 = vmatprep.subr.mxu0 0.0
  %465 = vmatpush1.msra.mxu0 0.0
  %466 = vmatprep.subr.mxu0 0.0
  %467 = vmatpush1.msra.mxu0 0.0
  %468 = vmatprep.subr.mxu0 0.0
  %469 = vmatpush1.msra.mxu0 0.0
  %470 = vmatprep.subr.mxu0 0.0
  %471 = vmatpush1.msra.mxu0 0.0
  %472 = vmatprep.subr.mxu0 0.0
  %473 = vmatpush1.msra.mxu0 0.0
  %474 = vmatprep.subr.mxu0 0.0
  %475 = vmatpush1.msra.mxu0 0.0
  %476 = vmatprep.subr.mxu0 0.0
  %477 = vmatpush1.msra.mxu0 0.0
  %478 = vmatprep.subr.mxu0 0.0
  %479 = vmatpush1.msra.mxu0 0.0
  %480 = vmatprep.subr.mxu0 0.0
  %481 = vmatpush1.msra.mxu0 0.0
  %482 = vmatprep.subr.mxu0 %v450
  %483 = vmatpush1.msra.mxu0 %v448
  %484 = vmatprep.subr.mxu0 0.0
  %485 = vmatpush2.msra.mxu0 0.0
  %486 = vmatprep.subr.mxu0 0.0
  %487 = vmatpush2.msra.mxu0 0.0
  %488 = vmatprep.subr.mxu0 0.0
  %489 = vmatpush2.msra.mxu0 0.0
  %490 = vmatprep.subr.mxu0 0.0
  %491 = vmatpush2.msra.mxu0 0.0
  %492 = vmatprep.subr.mxu0 0.0
  %493 = vmatpush2.msra.mxu0 0.0
  %494 = vmatprep.subr.mxu0 0.0
  %495 = vmatpush2.msra.mxu0 0.0
  %496 = vmatprep.subr.mxu0 0.0
  %497 = vmatpush2.msra.mxu0 0.0
  %498 = vmatprep.subr.mxu0 0.0
  %499 = vmatpush2.msra.mxu0 0.0
  %500 = vmatprep.subr.mxu0 0.0
  %501 = vmatpush2.msra.mxu0 0.0
  %502 = vmatprep.subr.mxu0 0.0
  %503 = vmatpush2.msra.mxu0 0.0
  %504 = vmatprep.subr.mxu0 0.0
  %505 = vmatpush2.msra.mxu0 0.0
  %506 = vmatprep.subr.mxu0 0.0
  %507 = vmatpush2.msra.mxu0 0.0
  %508 = vmatprep.subr.mxu0 0.0
  %509 = vmatpush2.msra.mxu0 0.0
  %510 = vmatprep.subr.mxu0 0.0
  %511 = vmatpush2.msra.mxu0 0.0
  %512 = vmatprep.subr.mxu0 0.0
  %513 = vmatpush2.msra.mxu0 0.0
  %514 = vmatprep.subr.mxu0 0.0
  %515 = vmatpush2.msra.mxu0 0.0
  %516 = vmatprep.mubr.f32.mxu0 0.0
  %517 = vmatmul.mubr.f32.gmra.mxu0 %v366
  %v518 = vpop.f32.mrf.mxu0
  %v519 = vadd.f32 %v363, %v518
  %v520 = vpop.f32.mrf.mxu0
  %v521 = vadd.f32 %v363, %v520
  %522 = vdwg.mxu0
  %s523 = scalar_lea.vmem %s4, 16
  %524 = vst [vmem:[%s523] sm:$0xff] %v519
  %525 = vst [vmem:[%s523 + $0x8] sm:$0xff] %v521
  // Predicated region
  $region18: #{conv1x1_bn.1} parent=0 // pred_check
    _
  $region19: #{conv1x1_bn.1} parent=0 // pred_check_branch
    %527 = sbr.rel (0) target = $region21
  $region20: #{conv1x1_bn.1} parent=0 // pred_region
    _
  $region21: #{conv1x1_bn.1} parent=0 // pred_fallthru
    _
  // Predicated region
  $region22: #{conv1x1_bn.1} parent=0 // pred_check
    _
  $region23: #{conv1x1_bn.1} parent=0 // pred_check_branch
    %529 = sbr.rel (0) target = $region25
  $region24: #{conv1x1_bn.1} parent=0 // pred_region
    _
  $region25: #{conv1x1_bn.1} parent=0 // pred_fallthru
    _

</llo_original>
